<compile_context>
chip_gen: v7x
topology: tpu7x:2x2x1
jax: 0.10.0
libtpu: 0.0.40
codegen_flags: <defaults>
</compile_context>

<pallas_src>
import functools

import numpy as np
import jax
import jax.numpy as jnp
from jax.experimental import pallas as pl
from jax.experimental.pallas import tpu as pltpu


# ----------------------------------------------------------------------------
# Static tables from MyModel.__init__ (fixed buffers, not learned).
# ----------------------------------------------------------------------------
CABIN_P1_MODENA = np.array(
    [[-20.0, 3.0], [-10.0, 2.0], [0.0, 0.88], [10.0, 0.38], [25.0, 0.7],
     [30.0, 1.0], [35.0, 1.31], [40.0, 2.5], [45.0, 3.0]], np.float32)
CABIN_P1_LEMANS = np.array(
    [[-20.0, 3.0], [-10.0, 2.0], [0.0, 0.875], [10.0, 0.375], [25.0, 0.69531],
     [30.0, 1.0], [35.0, 1.3125], [40.0, 2.5], [45.0, 3.0]], np.float32)
TEMP_SET = np.array([18.0, 20, 22, 24, 26, 28, 30, 31.5, 32], np.float32)           # (9,)
TEMP_ENVR = np.array([-30.0, -20, -10, 0, 5, 10, 15, 20, 25, 30, 35, 40, 45, 50],
                     np.float32)                                                     # (14,)
CABIN_SP = np.array(
    [[17.0, 17, 17, 17, 17, 17, 17, 17, 17, 17, 17, 17, 17, 17],
     [20, 20, 19.5, 19.5, 19.5, 19, 19, 19, 18.5, 18.5, 18, 18, 18, 18],
     [22, 22, 22, 22.5, 22.5, 22.5, 22, 22, 21, 21, 21, 21, 20.5, 20],
     [24, 24.5, 25.5, 25.5, 26, 26, 25.5, 25, 24.5, 24, 23.5, 23, 23, 23],
     [27, 26.5, 27, 27.5, 28, 28, 27.5, 27, 26.5, 26, 25.5, 26, 26, 26],
     [29, 28.5, 28.5, 29.5, 30, 30, 29.5, 29, 29, 29, 28, 28, 29, 29],
     [31, 30.5, 30.5, 31.5, 32, 32, 32, 31, 31, 31, 31, 31, 31, 31],
     [32, 32, 32, 33, 33, 33, 33, 33, 33, 33, 33, 33, 32, 32],
     [32, 32, 36, 36, 36, 36, 36, 36, 36, 36, 36, 36, 36, 36]], np.float32)          # (9, 14)
CABIN_P2 = np.array(
    [[-20.0, 3.0], [-15.0, 2.0], [-10.0, 1.0], [-5.0, 0.5], [0.0, 0.4],
     [5.0, 0.5], [10.0, 1.5], [15.0, 3.0], [20.0, 6.0]], np.float32)

LANES = 128      # batch maps to the lane axis
SUB_TILE = 512   # sublane-rows per grid step: 512*128 = 65536 samples / step
                 # (4 in + 1 out blocks = 1.25 MiB, ~2.5 MiB double-buffered)


def _round_up(a, m):
    return -(-a // m) * m


# ----------------------------------------------------------------------------
# Host-side precompute: per-segment slope/intercept and reciprocal spacings,
# baked into the kernel as scalar immediates (no in-kernel divides or gathers).
# ----------------------------------------------------------------------------
def _seg_affine(knots, values):
    k = np.asarray(knots, np.float64)
    v = np.asarray(values, np.float64)
    a = (v[1:] - v[:-1]) / (k[1:] - k[:-1])
    b = v[:-1] - a * k[:-1]
    return tuple(float(x) for x in a), tuple(float(x) for x in b)


@functools.lru_cache(maxsize=4)
def _build_consts(car_type):
    if "modena" in car_type:
        p1 = CABIN_P1_MODENA
    elif "lemans" in car_type:
        p1 = CABIN_P1_LEMANS
    else:
        raise ValueError("unknown car_type")
    p1_a, p1_b = _seg_affine(p1[:, 0], p1[:, 1])
    p2_a, p2_b = _seg_affine(CABIN_P2[:, 0], CABIN_P2[:, 1])
    sp_ay, sp_by = [], []
    for i in range(CABIN_SP.shape[0]):
        a, b = _seg_affine(TEMP_ENVR, CABIN_SP[i])
        sp_ay.append(a)
        sp_by.append(b)
    return dict(
        p1_knots=tuple(float(v) for v in p1[:, 0]), p1_a=p1_a, p1_b=p1_b,
        p2_knots=tuple(float(v) for v in CABIN_P2[:, 0]), p2_a=p2_a, p2_b=p2_b,
        envr_knots=tuple(float(v) for v in TEMP_ENVR),
        set_knots=tuple(float(v) for v in TEMP_SET),
        set_x0=tuple(float(v) for v in TEMP_SET[:-1]),
        set_invdx=tuple(float(1.0 / d) for d in np.diff(TEMP_SET.astype(np.float64))),
        sp_ay=tuple(sp_ay), sp_by=tuple(sp_by),
    )


# ----------------------------------------------------------------------------
# In-kernel helpers: gather-free, divide-free segment selection via single-op
# vsel (jnp.where) chains.  Everything is dense (tile_rows, 128) VPU work.
# ----------------------------------------------------------------------------
def _where_chain(masks, vals, shape):
    """Select vals[seg] where seg = number of interior knots <= query.

    masks[k-1] == (query >= knots[k]) for interior knots k = 1..N-2; processed
    in increasing knot order so the last satisfied mask wins.  Statically
    skips knots whose adjacent table values are equal.
    """
    acc = jnp.full(shape, float(vals[0]), jnp.float32)
    for k, m in enumerate(masks, start=1):
        if vals[k] != vals[k - 1]:
            acc = jnp.where(m, jnp.float32(vals[k]), acc)
    return acc


def _ac_kprate_kernel(amb_ref, fl_ref, fr_ref, inc_ref, out_ref, *, c):
    temp_amb = amb_ref[...]        # (tile_rows, 128)
    fl_set = fl_ref[...]
    fr_set = fr_ref[...]
    temp_incar = inc_ref[...]
    shape = temp_amb.shape

    # --- AC_KpRateCabin1 = inter1D(CabinP1, temp_amb) -------------------------
    p1k = c["p1_knots"]
    t1 = jnp.clip(temp_amb, p1k[0], p1k[-1])
    m1 = [t1 >= jnp.float32(p1k[k]) for k in range(1, len(p1k) - 1)]
    kp1 = _where_chain(m1, c["p1_a"], shape) * t1 + _where_chain(m1, c["p1_b"], shape)

    # --- shared y-axis (temp_amb along TEMP_ENVR) masks, computed once --------
    yk = c["envr_knots"]
    yc = jnp.clip(temp_amb, yk[0], yk[-1])
    my = [yc >= jnp.float32(yk[k]) for k in range(1, len(yk) - 1)]      # 12 masks

    def cy_row(i):
        # y-interpolated value of CabinSP row i at temp_amb
        a = _where_chain(my, c["sp_ay"][i], shape)
        b = _where_chain(my, c["sp_by"][i], shape)
        return a * yc + b

    # --- x-axis (set temperature) segment masks + blend weights ---------------
    xk = c["set_knots"]

    def x_weights(xq):
        xc = jnp.clip(xq, xk[0], xk[-1])
        mx = [xc >= jnp.float32(xk[k]) for k in range(1, len(xk) - 1)]  # 7 masks
        x0 = _where_chain(mx, c["set_x0"], shape)
        wx = (xc - x0) * _where_chain(mx, c["set_invdx"], shape)
        return mx, wx

    mx_fl, wx_fl = x_weights(fl_set)
    mx_fr, wx_fr = x_weights(fr_set)

    # --- streamed bilinear: fold each CabinSP row into lo/hi accumulators -----
    # lo = Cy[ix], hi = Cy[ix+1]; Cy rows are produced one at a time and
    # consumed by both the FL and FR queries, then discarded.
    cy_cur = cy_row(0)
    cy_next = cy_row(1)
    lo_fl, hi_fl = cy_cur, cy_next
    lo_fr, hi_fr = cy_cur, cy_next
    n_rows = len(c["sp_ay"])                       # 9
    for i in range(1, n_rows - 1):                 # interior x-knots 1..7
        cy_cur = cy_next
        cy_next = cy_row(i + 1)
        lo_fl = jnp.where(mx_fl[i - 1], cy_cur, lo_fl)
        hi_fl = jnp.where(mx_fl[i - 1], cy_next, hi_fl)
        lo_fr = jnp.where(mx_fr[i - 1], cy_cur, lo_fr)
        hi_fr = jnp.where(mx_fr[i - 1], cy_next, hi_fr)

    err_fl = lo_fl + wx_fl * (hi_fl - lo_fl) - temp_incar
    err_fr = lo_fr + wx_fr * (hi_fr - lo_fr) - temp_incar
    err = jnp.minimum(err_fl, err_fr)

    # --- AC_KpRateCabin2 = inter1D(CabinP2, err) -------------------------------
    p2k = c["p2_knots"]
    t2 = jnp.clip(err, p2k[0], p2k[-1])
    m2 = [t2 >= jnp.float32(p2k[k]) for k in range(1, len(p2k) - 1)]
    kp2 = _where_chain(m2, c["p2_a"], shape) * t2 + _where_chain(m2, c["p2_b"], shape)

    out_ref[...] = jnp.minimum(kp1, kp2)


# ----------------------------------------------------------------------------
# Wrapper: extract the 4 used columns as (rows_pad, 128) planes, tile with a
# real batch grid.  jit'd so the column-gather / pad / reshape fuses with the
# pallas_call instead of being a standalone HBM-heavy pre-pass.
# ----------------------------------------------------------------------------
def _forward_impl(x, car_type="modena"):
    x = jnp.asarray(x, jnp.float32)
    if x.ndim == 1:
        x = x[None, :]
    B = x.shape[0]

    rows = pl.cdiv(B, LANES)
    if rows <= 8:
        tile_rows = rows                      # block == full extent, always legal
    else:
        # big tiles to amortize per-step overhead, but keep >= 2 grid steps so
        # the "parallel" axis can shard across v7x's two TensorCores.
        tile_rows = min(SUB_TILE, _round_up(-(-rows // 2), 8))
    rows_pad = _round_up(rows, tile_rows)
    b_pad = rows_pad * LANES

    def plane(col):
        v = x[:, col]
        if b_pad != B:
            v = jnp.pad(v, (0, b_pad - B))    # padded lanes are clamped in-kernel
        return v.reshape(rows_pad, LANES)

    amb, fl, fr, inc = plane(1), plane(2), plane(3), plane(8)

    kernel = functools.partial(_ac_kprate_kernel, c=_build_consts(car_type))
    spec = pl.BlockSpec((tile_rows, LANES), lambda i: (i, 0))

    out = pl.pallas_call(
        kernel,
        out_shape=jax.ShapeDtypeStruct((rows_pad, LANES), jnp.float32),
        grid=(rows_pad // tile_rows,),
        in_specs=[spec, spec, spec, spec],
        out_specs=spec,
        compiler_params=pltpu.CompilerParams(
            dimension_semantics=("parallel",)),
    )(amb, fl, fr, inc)

    return out.reshape(-1)[:B][:, None]


ac_kprate_forward = jax.jit(_forward_impl, static_argnames=("car_type",))


# ----------------------------------------------------------------------------
# Plain-numpy reference for the correctness check.
# ----------------------------------------------------------------------------
def _ref_interp2d(xg, yg, tb, xq, yq):
    xg, yg, tb = map(np.asarray, (xg, yg, tb))
    xq = np.clip(np.asarray(xq), xg[0], xg[-1])
    yq = np.clip(np.asarray(yq), yg[0], yg[-1])
    ix = np.clip(np.searchsorted(xg, xq, side="right") - 1, 0, len(xg) - 2)
    iy = np.clip(np.searchsorted(yg, yq, side="right") - 1, 0, len(yg) - 2)
    wx = (xq - xg[ix]) / (xg[ix + 1] - xg[ix])
    wy = (yq - yg[iy]) / (yg[iy + 1] - yg[iy])
    return ((1 - wx) * (1 - wy) * tb[ix, iy] + (1 - wx) * wy * tb[ix, iy + 1]
            + wx * (1 - wy) * tb[ix + 1, iy] + wx * wy * tb[ix + 1, iy + 1])


def _ref_forward(x, car_type="modena"):
    x = np.asarray(x, np.float32)
    p1 = CABIN_P1_MODENA if "modena" in car_type else CABIN_P1_LEMANS
    temp_amb, fl, fr, incar = x[:, 1], x[:, 2], x[:, 3], x[:, 8]
    kp1 = np.interp(np.clip(temp_amb, p1[0, 0], p1[-1, 0]), p1[:, 0], p1[:, 1])
    err_fl = _ref_interp2d(TEMP_SET, TEMP_ENVR, CABIN_SP, fl, temp_amb) - incar
    err_fr = _ref_interp2d(TEMP_SET, TEMP_ENVR, CABIN_SP, fr, temp_amb) - incar
    err = np.minimum(err_fl, err_fr)
    kp2 = np.interp(np.clip(err, CABIN_P2[0, 0], CABIN_P2[-1, 0]),
                    CABIN_P2[:, 0], CABIN_P2[:, 1])
    return np.minimum(kp1, kp2)[:, None].astype(np.float32)


def _make_inputs(key, B, F=11):
    u = jax.random.uniform(key, (B, F), jnp.float32)
    x = u * 10.0
    x = x.at[:, 1].set(u[:, 1] * 80.0 - 30.0)    # temp_amb   in [-30, 50]
    x = x.at[:, 2].set(u[:, 2] * 14.0 + 18.0)    # cab FL set in [18, 32]
    x = x.at[:, 3].set(u[:, 3] * 14.0 + 18.0)    # cab FR set in [18, 32]
    x = x.at[:, 8].set(u[:, 8] * 30.0 + 5.0)     # temp_incar in [5, 35]
    return x


if __name__ == "__main__":
    key = jax.random.PRNGKey(0)
    # Small primary case plus two sizes that exercise lane padding and the
    # multi-step tiled grid path (B=5000 -> 2 grid steps on the batch axis).
    for i, B in enumerate((4, 300, 5000)):
        x = _make_inputs(jax.random.fold_in(key, i), B)
        out = jax.block_until_ready(ac_kprate_forward(x, car_type="modena"))
        ref = _ref_forward(np.asarray(x), car_type="modena")
        np.testing.assert_allclose(np.asarray(out), ref, rtol=1e-4, atol=1e-4)
    print("KERNEL_OK")
</pallas_src>

<mosaic_0001>
module attributes {stable_mosaic.version = 11 : i64} {
  func.func @_ac_kprate_kernel(%arg0: i32, %arg1: memref<1x128xf32, #tpu.memory_space<vmem>>, %arg2: memref<1x128xf32, #tpu.memory_space<vmem>>, %arg3: memref<1x128xf32, #tpu.memory_space<vmem>>, %arg4: memref<1x128xf32, #tpu.memory_space<vmem>>, %arg5: memref<1x128xf32, #tpu.memory_space<vmem>>) attributes {dimension_semantics = [#tpu.dimension_semantics<parallel>], iteration_bounds = array<i64: 1>, scalar_prefetch = 0 : i64, scratch_operands = 0 : i64, tpu.core_type = #tpu.core_type<tc>, window_params = [{transform_indices = @transform_0, window_bounds = array<i64: 1, 128>}, {transform_indices = @transform_1, window_bounds = array<i64: 1, 128>}, {transform_indices = @transform_2, window_bounds = array<i64: 1, 128>}, {transform_indices = @transform_3, window_bounds = array<i64: 1, 128>}, {transform_indices = @transform_4, window_bounds = array<i64: 1, 128>}]} {
    %c0 = arith.constant 0 : index
    %c0_0 = arith.constant 0 : index
    %0 = vector.load %arg1[%c0, %c0_0] : memref<1x128xf32, #tpu.memory_space<vmem>>, vector<1x128xf32>
    %c0_1 = arith.constant 0 : index
    %c0_2 = arith.constant 0 : index
    %1 = vector.load %arg2[%c0_1, %c0_2] : memref<1x128xf32, #tpu.memory_space<vmem>>, vector<1x128xf32>
    %c0_3 = arith.constant 0 : index
    %c0_4 = arith.constant 0 : index
    %2 = vector.load %arg3[%c0_3, %c0_4] : memref<1x128xf32, #tpu.memory_space<vmem>>, vector<1x128xf32>
    %c0_5 = arith.constant 0 : index
    %c0_6 = arith.constant 0 : index
    %3 = vector.load %arg4[%c0_5, %c0_6] : memref<1x128xf32, #tpu.memory_space<vmem>>, vector<1x128xf32>
    %cst = arith.constant -2.000000e+01 : f32
    %cst_7 = arith.constant 4.500000e+01 : f32
    %4 = vector.broadcast %cst : f32 to vector<1x128xf32>
    %5 = arith.maximumf %4, %0 : vector<1x128xf32>
    %6 = vector.broadcast %cst_7 : f32 to vector<1x128xf32>
    %7 = arith.minimumf %6, %5 : vector<1x128xf32>
    %cst_8 = arith.constant -1.000000e+01 : f32
    %8 = vector.broadcast %cst_8 : f32 to vector<1x128xf32>
    %9 = arith.cmpf oge, %7, %8 : vector<1x128xf32>
    %cst_9 = arith.constant 0.000000e+00 : f32
    %10 = vector.broadcast %cst_9 : f32 to vector<1x128xf32>
    %11 = arith.cmpf oge, %7, %10 : vector<1x128xf32>
    %cst_10 = arith.constant 1.000000e+01 : f32
    %12 = vector.broadcast %cst_10 : f32 to vector<1x128xf32>
    %13 = arith.cmpf oge, %7, %12 : vector<1x128xf32>
    %cst_11 = arith.constant 2.500000e+01 : f32
    %14 = vector.broadcast %cst_11 : f32 to vector<1x128xf32>
    %15 = arith.cmpf oge, %7, %14 : vector<1x128xf32>
    %cst_12 = arith.constant 3.000000e+01 : f32
    %16 = vector.broadcast %cst_12 : f32 to vector<1x128xf32>
    %17 = arith.cmpf oge, %7, %16 : vector<1x128xf32>
    %cst_13 = arith.constant 3.500000e+01 : f32
    %18 = vector.broadcast %cst_13 : f32 to vector<1x128xf32>
    %19 = arith.cmpf oge, %7, %18 : vector<1x128xf32>
    %cst_14 = arith.constant 4.000000e+01 : f32
    %20 = vector.broadcast %cst_14 : f32 to vector<1x128xf32>
    %21 = arith.cmpf oge, %7, %20 : vector<1x128xf32>
    %cst_15 = arith.constant -1.000000e-01 : f32
    %22 = vector.broadcast %cst_15 : f32 to vector<1x128xf32>
    %cst_16 = arith.constant -1.120000e-01 : f32
    %23 = vector.broadcast %cst_16 : f32 to vector<1x128xf32>
    %24 = arith.select %9, %23, %22 : vector<1x128xi1>, vector<1x128xf32>
    %cst_17 = arith.constant -5.000000e-02 : f32
    %25 = vector.broadcast %cst_17 : f32 to vector<1x128xf32>
    %26 = arith.select %11, %25, %24 : vector<1x128xi1>, vector<1x128xf32>
    %cst_18 = arith.constant 0.0213333331 : f32
    %27 = vector.broadcast %cst_18 : f32 to vector<1x128xf32>
    %28 = arith.select %13, %27, %26 : vector<1x128xi1>, vector<1x128xf32>
    %cst_19 = arith.constant 0.0600000024 : f32
    %29 = vector.broadcast %cst_19 : f32 to vector<1x128xf32>
    %30 = arith.select %15, %29, %28 : vector<1x128xi1>, vector<1x128xf32>
    %cst_20 = arith.constant 0.0619999878 : f32
    %31 = vector.broadcast %cst_20 : f32 to vector<1x128xf32>
    %32 = arith.select %17, %31, %30 : vector<1x128xi1>, vector<1x128xf32>
    %cst_21 = arith.constant 2.380000e-01 : f32
    %33 = vector.broadcast %cst_21 : f32 to vector<1x128xf32>
    %34 = arith.select %19, %33, %32 : vector<1x128xi1>, vector<1x128xf32>
    %cst_22 = arith.constant 1.000000e-01 : f32
    %35 = vector.broadcast %cst_22 : f32 to vector<1x128xf32>
    %36 = arith.select %21, %35, %34 : vector<1x128xi1>, vector<1x128xf32>
    %37 = arith.mulf %36, %7 : vector<1x128xf32>
    %cst_23 = arith.constant 1.000000e+00 : f32
    %38 = vector.broadcast %cst_23 : f32 to vector<1x128xf32>
    %cst_24 = arith.constant 0.879999995 : f32
    %39 = vector.broadcast %cst_24 : f32 to vector<1x128xf32>
    %40 = arith.select %9, %39, %38 : vector<1x128xi1>, vector<1x128xf32>
    %cst_25 = arith.constant 0.166666672 : f32
    %41 = vector.broadcast %cst_25 : f32 to vector<1x128xf32>
    %42 = arith.select %13, %41, %40 : vector<1x128xi1>, vector<1x128xf32>
    %cst_26 = arith.constant -0.800000071 : f32
    %43 = vector.broadcast %cst_26 : f32 to vector<1x128xf32>
    %44 = arith.select %15, %43, %42 : vector<1x128xi1>, vector<1x128xf32>
    %cst_27 = arith.constant -0.859999656 : f32
    %45 = vector.broadcast %cst_27 : f32 to vector<1x128xf32>
    %46 = arith.select %17, %45, %44 : vector<1x128xi1>, vector<1x128xf32>
    %cst_28 = arith.constant -7.02000046 : f32
    %47 = vector.broadcast %cst_28 : f32 to vector<1x128xf32>
    %48 = arith.select %19, %47, %46 : vector<1x128xi1>, vector<1x128xf32>
    %cst_29 = arith.constant -1.500000e+00 : f32
    %49 = vector.broadcast %cst_29 : f32 to vector<1x128xf32>
    %50 = arith.select %21, %49, %48 : vector<1x128xi1>, vector<1x128xf32>
    %51 = arith.addf %37, %50 : vector<1x128xf32>
    %cst_30 = arith.constant -3.000000e+01 : f32
    %cst_31 = arith.constant 5.000000e+01 : f32
    %52 = vector.broadcast %cst_30 : f32 to vector<1x128xf32>
    %53 = arith.maximumf %52, %0 : vector<1x128xf32>
    %54 = vector.broadcast %cst_31 : f32 to vector<1x128xf32>
    %55 = arith.minimumf %54, %53 : vector<1x128xf32>
    %cst_32 = arith.constant -2.000000e+01 : f32
    %56 = vector.broadcast %cst_32 : f32 to vector<1x128xf32>
    %57 = arith.cmpf oge, %55, %56 : vector<1x128xf32>
    %cst_33 = arith.constant -1.000000e+01 : f32
    %58 = vector.broadcast %cst_33 : f32 to vector<1x128xf32>
    %59 = arith.cmpf oge, %55, %58 : vector<1x128xf32>
    %cst_34 = arith.constant 0.000000e+00 : f32
    %60 = vector.broadcast %cst_34 : f32 to vector<1x128xf32>
    %61 = arith.cmpf oge, %55, %60 : vector<1x128xf32>
    %cst_35 = arith.constant 5.000000e+00 : f32
    %62 = vector.broadcast %cst_35 : f32 to vector<1x128xf32>
    %63 = arith.cmpf oge, %55, %62 : vector<1x128xf32>
    %cst_36 = arith.constant 1.000000e+01 : f32
    %64 = vector.broadcast %cst_36 : f32 to vector<1x128xf32>
    %65 = arith.cmpf oge, %55, %64 : vector<1x128xf32>
    %cst_37 = arith.constant 1.500000e+01 : f32
    %66 = vector.broadcast %cst_37 : f32 to vector<1x128xf32>
    %67 = arith.cmpf oge, %55, %66 : vector<1x128xf32>
    %cst_38 = arith.constant 2.000000e+01 : f32
    %68 = vector.broadcast %cst_38 : f32 to vector<1x128xf32>
    %69 = arith.cmpf oge, %55, %68 : vector<1x128xf32>
    %cst_39 = arith.constant 2.500000e+01 : f32
    %70 = vector.broadcast %cst_39 : f32 to vector<1x128xf32>
    %71 = arith.cmpf oge, %55, %70 : vector<1x128xf32>
    %cst_40 = arith.constant 3.000000e+01 : f32
    %72 = vector.broadcast %cst_40 : f32 to vector<1x128xf32>
    %73 = arith.cmpf oge, %55, %72 : vector<1x128xf32>
    %cst_41 = arith.constant 3.500000e+01 : f32
    %74 = vector.broadcast %cst_41 : f32 to vector<1x128xf32>
    %75 = arith.cmpf oge, %55, %74 : vector<1x128xf32>
    %cst_42 = arith.constant 4.000000e+01 : f32
    %76 = vector.broadcast %cst_42 : f32 to vector<1x128xf32>
    %77 = arith.cmpf oge, %55, %76 : vector<1x128xf32>
    %cst_43 = arith.constant 4.500000e+01 : f32
    %78 = vector.broadcast %cst_43 : f32 to vector<1x128xf32>
    %79 = arith.cmpf oge, %55, %78 : vector<1x128xf32>
    %cst_44 = arith.constant 1.800000e+01 : f32
    %cst_45 = arith.constant 3.200000e+01 : f32
    %80 = vector.broadcast %cst_44 : f32 to vector<1x128xf32>
    %81 = arith.maximumf %80, %1 : vector<1x128xf32>
    %82 = vector.broadcast %cst_45 : f32 to vector<1x128xf32>
    %83 = arith.minimumf %82, %81 : vector<1x128xf32>
    %cst_46 = arith.constant 2.000000e+01 : f32
    %84 = vector.broadcast %cst_46 : f32 to vector<1x128xf32>
    %85 = arith.cmpf oge, %83, %84 : vector<1x128xf32>
    %cst_47 = arith.constant 2.200000e+01 : f32
    %86 = vector.broadcast %cst_47 : f32 to vector<1x128xf32>
    %87 = arith.cmpf oge, %83, %86 : vector<1x128xf32>
    %cst_48 = arith.constant 2.400000e+01 : f32
    %88 = vector.broadcast %cst_48 : f32 to vector<1x128xf32>
    %89 = arith.cmpf oge, %83, %88 : vector<1x128xf32>
    %cst_49 = arith.constant 2.600000e+01 : f32
    %90 = vector.broadcast %cst_49 : f32 to vector<1x128xf32>
    %91 = arith.cmpf oge, %83, %90 : vector<1x128xf32>
    %cst_50 = arith.constant 2.800000e+01 : f32
    %92 = vector.broadcast %cst_50 : f32 to vector<1x128xf32>
    %93 = arith.cmpf oge, %83, %92 : vector<1x128xf32>
    %cst_51 = arith.constant 3.000000e+01 : f32
    %94 = vector.broadcast %cst_51 : f32 to vector<1x128xf32>
    %95 = arith.cmpf oge, %83, %94 : vector<1x128xf32>
    %cst_52 = arith.constant 3.150000e+01 : f32
    %96 = vector.broadcast %cst_52 : f32 to vector<1x128xf32>
    %97 = arith.cmpf oge, %83, %96 : vector<1x128xf32>
    %cst_53 = arith.constant 1.800000e+01 : f32
    %98 = vector.broadcast %cst_53 : f32 to vector<1x128xf32>
    %cst_54 = arith.constant 2.000000e+01 : f32
    %99 = vector.broadcast %cst_54 : f32 to vector<1x128xf32>
    %100 = arith.select %85, %99, %98 : vector<1x128xi1>, vector<1x128xf32>
    %cst_55 = arith.constant 2.200000e+01 : f32
    %101 = vector.broadcast %cst_55 : f32 to vector<1x128xf32>
    %102 = arith.select %87, %101, %100 : vector<1x128xi1>, vector<1x128xf32>
    %cst_56 = arith.constant 2.400000e+01 : f32
    %103 = vector.broadcast %cst_56 : f32 to vector<1x128xf32>
    %104 = arith.select %89, %103, %102 : vector<1x128xi1>, vector<1x128xf32>
    %cst_57 = arith.constant 2.600000e+01 : f32
    %105 = vector.broadcast %cst_57 : f32 to vector<1x128xf32>
    %106 = arith.select %91, %105, %104 : vector<1x128xi1>, vector<1x128xf32>
    %cst_58 = arith.constant 2.800000e+01 : f32
    %107 = vector.broadcast %cst_58 : f32 to vector<1x128xf32>
    %108 = arith.select %93, %107, %106 : vector<1x128xi1>, vector<1x128xf32>
    %cst_59 = arith.constant 3.000000e+01 : f32
    %109 = vector.broadcast %cst_59 : f32 to vector<1x128xf32>
    %110 = arith.select %95, %109, %108 : vector<1x128xi1>, vector<1x128xf32>
    %cst_60 = arith.constant 3.150000e+01 : f32
    %111 = vector.broadcast %cst_60 : f32 to vector<1x128xf32>
    %112 = arith.select %97, %111, %110 : vector<1x128xi1>, vector<1x128xf32>
    %113 = arith.subf %83, %112 : vector<1x128xf32>
    %cst_61 = arith.constant 5.000000e-01 : f32
    %114 = vector.broadcast %cst_61 : f32 to vector<1x128xf32>
    %cst_62 = arith.constant 0.666666686 : f32
    %115 = vector.broadcast %cst_62 : f32 to vector<1x128xf32>
    %116 = arith.select %95, %115, %114 : vector<1x128xi1>, vector<1x128xf32>
    %cst_63 = arith.constant 2.000000e+00 : f32
    %117 = vector.broadcast %cst_63 : f32 to vector<1x128xf32>
    %118 = arith.select %97, %117, %116 : vector<1x128xi1>, vector<1x128xf32>
    %119 = arith.mulf %113, %118 : vector<1x128xf32>
    %cst_64 = arith.constant 1.800000e+01 : f32
    %cst_65 = arith.constant 3.200000e+01 : f32
    %120 = vector.broadcast %cst_64 : f32 to vector<1x128xf32>
    %121 = arith.maximumf %120, %2 : vector<1x128xf32>
    %122 = vector.broadcast %cst_65 : f32 to vector<1x128xf32>
    %123 = arith.minimumf %122, %121 : vector<1x128xf32>
    %cst_66 = arith.constant 2.000000e+01 : f32
    %124 = vector.broadcast %cst_66 : f32 to vector<1x128xf32>
    %125 = arith.cmpf oge, %123, %124 : vector<1x128xf32>
    %cst_67 = arith.constant 2.200000e+01 : f32
    %126 = vector.broadcast %cst_67 : f32 to vector<1x128xf32>
    %127 = arith.cmpf oge, %123, %126 : vector<1x128xf32>
    %cst_68 = arith.constant 2.400000e+01 : f32
    %128 = vector.broadcast %cst_68 : f32 to vector<1x128xf32>
    %129 = arith.cmpf oge, %123, %128 : vector<1x128xf32>
    %cst_69 = arith.constant 2.600000e+01 : f32
    %130 = vector.broadcast %cst_69 : f32 to vector<1x128xf32>
    %131 = arith.cmpf oge, %123, %130 : vector<1x128xf32>
    %cst_70 = arith.constant 2.800000e+01 : f32
    %132 = vector.broadcast %cst_70 : f32 to vector<1x128xf32>
    %133 = arith.cmpf oge, %123, %132 : vector<1x128xf32>
    %cst_71 = arith.constant 3.000000e+01 : f32
    %134 = vector.broadcast %cst_71 : f32 to vector<1x128xf32>
    %135 = arith.cmpf oge, %123, %134 : vector<1x128xf32>
    %cst_72 = arith.constant 3.150000e+01 : f32
    %136 = vector.broadcast %cst_72 : f32 to vector<1x128xf32>
    %137 = arith.cmpf oge, %123, %136 : vector<1x128xf32>
    %cst_73 = arith.constant 1.800000e+01 : f32
    %138 = vector.broadcast %cst_73 : f32 to vector<1x128xf32>
    %cst_74 = arith.constant 2.000000e+01 : f32
    %139 = vector.broadcast %cst_74 : f32 to vector<1x128xf32>
    %140 = arith.select %125, %139, %138 : vector<1x128xi1>, vector<1x128xf32>
    %cst_75 = arith.constant 2.200000e+01 : f32
    %141 = vector.broadcast %cst_75 : f32 to vector<1x128xf32>
    %142 = arith.select %127, %141, %140 : vector<1x128xi1>, vector<1x128xf32>
    %cst_76 = arith.constant 2.400000e+01 : f32
    %143 = vector.broadcast %cst_76 : f32 to vector<1x128xf32>
    %144 = arith.select %129, %143, %142 : vector<1x128xi1>, vector<1x128xf32>
    %cst_77 = arith.constant 2.600000e+01 : f32
    %145 = vector.broadcast %cst_77 : f32 to vector<1x128xf32>
    %146 = arith.select %131, %145, %144 : vector<1x128xi1>, vector<1x128xf32>
    %cst_78 = arith.constant 2.800000e+01 : f32
    %147 = vector.broadcast %cst_78 : f32 to vector<1x128xf32>
    %148 = arith.select %133, %147, %146 : vector<1x128xi1>, vector<1x128xf32>
    %cst_79 = arith.constant 3.000000e+01 : f32
    %149 = vector.broadcast %cst_79 : f32 to vector<1x128xf32>
    %150 = arith.select %135, %149, %148 : vector<1x128xi1>, vector<1x128xf32>
    %cst_80 = arith.constant 3.150000e+01 : f32
    %151 = vector.broadcast %cst_80 : f32 to vector<1x128xf32>
    %152 = arith.select %137, %151, %150 : vector<1x128xi1>, vector<1x128xf32>
    %153 = arith.subf %123, %152 : vector<1x128xf32>
    %cst_81 = arith.constant 5.000000e-01 : f32
    %154 = vector.broadcast %cst_81 : f32 to vector<1x128xf32>
    %cst_82 = arith.constant 0.666666686 : f32
    %155 = vector.broadcast %cst_82 : f32 to vector<1x128xf32>
    %156 = arith.select %135, %155, %154 : vector<1x128xi1>, vector<1x128xf32>
    %cst_83 = arith.constant 2.000000e+00 : f32
    %157 = vector.broadcast %cst_83 : f32 to vector<1x128xf32>
    %158 = arith.select %137, %157, %156 : vector<1x128xi1>, vector<1x128xf32>
    %159 = arith.mulf %153, %158 : vector<1x128xf32>
    %cst_84 = arith.constant 0.000000e+00 : f32
    %160 = vector.broadcast %cst_84 : f32 to vector<1x128xf32>
    %cst_85 = arith.constant 1.700000e+01 : f32
    %161 = vector.broadcast %cst_85 : f32 to vector<1x128xf32>
    %162 = arith.mulf %160, %55 : vector<1x128xf32>
    %163 = arith.addf %162, %161 : vector<1x128xf32>
    %cst_86 = arith.constant 0.000000e+00 : f32
    %164 = vector.broadcast %cst_86 : f32 to vector<1x128xf32>
    %cst_87 = arith.constant -5.000000e-02 : f32
    %165 = vector.broadcast %cst_87 : f32 to vector<1x128xf32>
    %166 = arith.select %57, %165, %164 : vector<1x128xi1>, vector<1x128xf32>
    %cst_88 = arith.constant 0.000000e+00 : f32
    %167 = vector.broadcast %cst_88 : f32 to vector<1x128xf32>
    %168 = arith.select %59, %167, %166 : vector<1x128xi1>, vector<1x128xf32>
    %cst_89 = arith.constant -1.000000e-01 : f32
    %169 = vector.broadcast %cst_89 : f32 to vector<1x128xf32>
    %170 = arith.select %63, %169, %168 : vector<1x128xi1>, vector<1x128xf32>
    %cst_90 = arith.constant 0.000000e+00 : f32
    %171 = vector.broadcast %cst_90 : f32 to vector<1x128xf32>
    %172 = arith.select %65, %171, %170 : vector<1x128xi1>, vector<1x128xf32>
    %cst_91 = arith.constant -1.000000e-01 : f32
    %173 = vector.broadcast %cst_91 : f32 to vector<1x128xf32>
    %174 = arith.select %69, %173, %172 : vector<1x128xi1>, vector<1x128xf32>
    %cst_92 = arith.constant 0.000000e+00 : f32
    %175 = vector.broadcast %cst_92 : f32 to vector<1x128xf32>
    %176 = arith.select %71, %175, %174 : vector<1x128xi1>, vector<1x128xf32>
    %cst_93 = arith.constant -1.000000e-01 : f32
    %177 = vector.broadcast %cst_93 : f32 to vector<1x128xf32>
    %178 = arith.select %73, %177, %176 : vector<1x128xi1>, vector<1x128xf32>
    %cst_94 = arith.constant 0.000000e+00 : f32
    %179 = vector.broadcast %cst_94 : f32 to vector<1x128xf32>
    %180 = arith.select %75, %179, %178 : vector<1x128xi1>, vector<1x128xf32>
    %cst_95 = arith.constant 2.000000e+01 : f32
    %181 = vector.broadcast %cst_95 : f32 to vector<1x128xf32>
    %cst_96 = arith.constant 1.900000e+01 : f32
    %182 = vector.broadcast %cst_96 : f32 to vector<1x128xf32>
    %183 = arith.select %57, %182, %181 : vector<1x128xi1>, vector<1x128xf32>
    %cst_97 = arith.constant 1.950000e+01 : f32
    %184 = vector.broadcast %cst_97 : f32 to vector<1x128xf32>
    %185 = arith.select %59, %184, %183 : vector<1x128xi1>, vector<1x128xf32>
    %cst_98 = arith.constant 2.000000e+01 : f32
    %186 = vector.broadcast %cst_98 : f32 to vector<1x128xf32>
    %187 = arith.select %63, %186, %185 : vector<1x128xi1>, vector<1x128xf32>
    %cst_99 = arith.constant 1.900000e+01 : f32
    %188 = vector.broadcast %cst_99 : f32 to vector<1x128xf32>
    %189 = arith.select %65, %188, %187 : vector<1x128xi1>, vector<1x128xf32>
    %cst_100 = arith.constant 2.100000e+01 : f32
    %190 = vector.broadcast %cst_100 : f32 to vector<1x128xf32>
    %191 = arith.select %69, %190, %189 : vector<1x128xi1>, vector<1x128xf32>
    %cst_101 = arith.constant 1.850000e+01 : f32
    %192 = vector.broadcast %cst_101 : f32 to vector<1x128xf32>
    %193 = arith.select %71, %192, %191 : vector<1x128xi1>, vector<1x128xf32>
    %cst_102 = arith.constant 2.150000e+01 : f32
    %194 = vector.broadcast %cst_102 : f32 to vector<1x128xf32>
    %195 = arith.select %73, %194, %193 : vector<1x128xi1>, vector<1x128xf32>
    %cst_103 = arith.constant 1.800000e+01 : f32
    %196 = vector.broadcast %cst_103 : f32 to vector<1x128xf32>
    %197 = arith.select %75, %196, %195 : vector<1x128xi1>, vector<1x128xf32>
    %198 = arith.mulf %180, %55 : vector<1x128xf32>
    %199 = arith.addf %198, %197 : vector<1x128xf32>
    %cst_104 = arith.constant 0.000000e+00 : f32
    %200 = vector.broadcast %cst_104 : f32 to vector<1x128xf32>
    %cst_105 = arith.constant 5.000000e-02 : f32
    %201 = vector.broadcast %cst_105 : f32 to vector<1x128xf32>
    %202 = arith.select %59, %201, %200 : vector<1x128xi1>, vector<1x128xf32>
    %cst_106 = arith.constant 0.000000e+00 : f32
    %203 = vector.broadcast %cst_106 : f32 to vector<1x128xf32>
    %204 = arith.select %61, %203, %202 : vector<1x128xi1>, vector<1x128xf32>
    %cst_107 = arith.constant -1.000000e-01 : f32
    %205 = vector.broadcast %cst_107 : f32 to vector<1x128xf32>
    %206 = arith.select %65, %205, %204 : vector<1x128xi1>, vector<1x128xf32>
    %cst_108 = arith.constant 0.000000e+00 : f32
    %207 = vector.broadcast %cst_108 : f32 to vector<1x128xf32>
    %208 = arith.select %67, %207, %206 : vector<1x128xi1>, vector<1x128xf32>
    %cst_109 = arith.constant -2.000000e-01 : f32
    %209 = vector.broadcast %cst_109 : f32 to vector<1x128xf32>
    %210 = arith.select %69, %209, %208 : vector<1x128xi1>, vector<1x128xf32>
    %cst_110 = arith.constant 0.000000e+00 : f32
    %211 = vector.broadcast %cst_110 : f32 to vector<1x128xf32>
    %212 = arith.select %71, %211, %210 : vector<1x128xi1>, vector<1x128xf32>
    %cst_111 = arith.constant -1.000000e-01 : f32
    %213 = vector.broadcast %cst_111 : f32 to vector<1x128xf32>
    %214 = arith.select %77, %213, %212 : vector<1x128xi1>, vector<1x128xf32>
    %cst_112 = arith.constant 2.200000e+01 : f32
    %215 = vector.broadcast %cst_112 : f32 to vector<1x128xf32>
    %cst_113 = arith.constant 2.250000e+01 : f32
    %216 = vector.broadcast %cst_113 : f32 to vector<1x128xf32>
    %217 = arith.select %59, %216, %215 : vector<1x128xi1>, vector<1x128xf32>
    %cst_114 = arith.constant 2.350000e+01 : f32
    %218 = vector.broadcast %cst_114 : f32 to vector<1x128xf32>
    %219 = arith.select %65, %218, %217 : vector<1x128xi1>, vector<1x128xf32>
    %cst_115 = arith.constant 2.200000e+01 : f32
    %220 = vector.broadcast %cst_115 : f32 to vector<1x128xf32>
    %221 = arith.select %67, %220, %219 : vector<1x128xi1>, vector<1x128xf32>
    %cst_116 = arith.constant 2.600000e+01 : f32
    %222 = vector.broadcast %cst_116 : f32 to vector<1x128xf32>
    %223 = arith.select %69, %222, %221 : vector<1x128xi1>, vector<1x128xf32>
    %cst_117 = arith.constant 2.100000e+01 : f32
    %224 = vector.broadcast %cst_117 : f32 to vector<1x128xf32>
    %225 = arith.select %71, %224, %223 : vector<1x128xi1>, vector<1x128xf32>
    %cst_118 = arith.constant 2.500000e+01 : f32
    %226 = vector.broadcast %cst_118 : f32 to vector<1x128xf32>
    %227 = arith.select %77, %226, %225 : vector<1x128xi1>, vector<1x128xf32>
    %228 = arith.mulf %214, %55 : vector<1x128xf32>
    %229 = arith.addf %228, %227 : vector<1x128xf32>
    %230 = arith.select %85, %199, %163 : vector<1x128xi1>, vector<1x128xf32>
    %231 = arith.select %85, %229, %199 : vector<1x128xi1>, vector<1x128xf32>
    %232 = arith.select %125, %199, %163 : vector<1x128xi1>, vector<1x128xf32>
    %233 = arith.select %125, %229, %199 : vector<1x128xi1>, vector<1x128xf32>
    %cst_119 = arith.constant 5.000000e-02 : f32
    %234 = vector.broadcast %cst_119 : f32 to vector<1x128xf32>
    %cst_120 = arith.constant 1.000000e-01 : f32
    %235 = vector.broadcast %cst_120 : f32 to vector<1x128xf32>
    %236 = arith.select %57, %235, %234 : vector<1x128xi1>, vector<1x128xf32>
    %cst_121 = arith.constant 0.000000e+00 : f32
    %237 = vector.broadcast %cst_121 : f32 to vector<1x128xf32>
    %238 = arith.select %59, %237, %236 : vector<1x128xi1>, vector<1x128xf32>
    %cst_122 = arith.constant 1.000000e-01 : f32
    %239 = vector.broadcast %cst_122 : f32 to vector<1x128xf32>
    %240 = arith.select %61, %239, %238 : vector<1x128xi1>, vector<1x128xf32>
    %cst_123 = arith.constant 0.000000e+00 : f32
    %241 = vector.broadcast %cst_123 : f32 to vector<1x128xf32>
    %242 = arith.select %63, %241, %240 : vector<1x128xi1>, vector<1x128xf32>
    %cst_124 = arith.constant -1.000000e-01 : f32
    %243 = vector.broadcast %cst_124 : f32 to vector<1x128xf32>
    %244 = arith.select %65, %243, %242 : vector<1x128xi1>, vector<1x128xf32>
    %cst_125 = arith.constant 0.000000e+00 : f32
    %245 = vector.broadcast %cst_125 : f32 to vector<1x128xf32>
    %246 = arith.select %77, %245, %244 : vector<1x128xi1>, vector<1x128xf32>
    %cst_126 = arith.constant 2.550000e+01 : f32
    %247 = vector.broadcast %cst_126 : f32 to vector<1x128xf32>
    %cst_127 = arith.constant 2.650000e+01 : f32
    %248 = vector.broadcast %cst_127 : f32 to vector<1x128xf32>
    %249 = arith.select %57, %248, %247 : vector<1x128xi1>, vector<1x128xf32>
    %cst_128 = arith.constant 2.550000e+01 : f32
    %250 = vector.broadcast %cst_128 : f32 to vector<1x128xf32>
    %251 = arith.select %59, %250, %249 : vector<1x128xi1>, vector<1x128xf32>
    %cst_129 = arith.constant 2.600000e+01 : f32
    %252 = vector.broadcast %cst_129 : f32 to vector<1x128xf32>
    %253 = arith.select %63, %252, %251 : vector<1x128xi1>, vector<1x128xf32>
    %cst_130 = arith.constant 2.700000e+01 : f32
    %254 = vector.broadcast %cst_130 : f32 to vector<1x128xf32>
    %255 = arith.select %65, %254, %253 : vector<1x128xi1>, vector<1x128xf32>
    %cst_131 = arith.constant 2.300000e+01 : f32
    %256 = vector.broadcast %cst_131 : f32 to vector<1x128xf32>
    %257 = arith.select %77, %256, %255 : vector<1x128xi1>, vector<1x128xf32>
    %258 = arith.mulf %246, %55 : vector<1x128xf32>
    %259 = arith.addf %258, %257 : vector<1x128xf32>
    %260 = arith.select %87, %229, %230 : vector<1x128xi1>, vector<1x128xf32>
    %261 = arith.select %87, %259, %231 : vector<1x128xi1>, vector<1x128xf32>
    %262 = arith.select %127, %229, %232 : vector<1x128xi1>, vector<1x128xf32>
    %263 = arith.select %127, %259, %233 : vector<1x128xi1>, vector<1x128xf32>
    %cst_132 = arith.constant -5.000000e-02 : f32
    %264 = vector.broadcast %cst_132 : f32 to vector<1x128xf32>
    %cst_133 = arith.constant 5.000000e-02 : f32
    %265 = vector.broadcast %cst_133 : f32 to vector<1x128xf32>
    %266 = arith.select %57, %265, %264 : vector<1x128xi1>, vector<1x128xf32>
    %cst_134 = arith.constant 1.000000e-01 : f32
    %267 = vector.broadcast %cst_134 : f32 to vector<1x128xf32>
    %268 = arith.select %61, %267, %266 : vector<1x128xi1>, vector<1x128xf32>
    %cst_135 = arith.constant 0.000000e+00 : f32
    %269 = vector.broadcast %cst_135 : f32 to vector<1x128xf32>
    %270 = arith.select %63, %269, %268 : vector<1x128xi1>, vector<1x128xf32>
    %cst_136 = arith.constant -1.000000e-01 : f32
    %271 = vector.broadcast %cst_136 : f32 to vector<1x128xf32>
    %272 = arith.select %65, %271, %270 : vector<1x128xi1>, vector<1x128xf32>
    %cst_137 = arith.constant 1.000000e-01 : f32
    %273 = vector.broadcast %cst_137 : f32 to vector<1x128xf32>
    %274 = arith.select %75, %273, %272 : vector<1x128xi1>, vector<1x128xf32>
    %cst_138 = arith.constant 0.000000e+00 : f32
    %275 = vector.broadcast %cst_138 : f32 to vector<1x128xf32>
    %276 = arith.select %77, %275, %274 : vector<1x128xi1>, vector<1x128xf32>
    %cst_139 = arith.constant 2.550000e+01 : f32
    %277 = vector.broadcast %cst_139 : f32 to vector<1x128xf32>
    %cst_140 = arith.constant 2.750000e+01 : f32
    %278 = vector.broadcast %cst_140 : f32 to vector<1x128xf32>
    %279 = arith.select %57, %278, %277 : vector<1x128xi1>, vector<1x128xf32>
    %cst_141 = arith.constant 2.800000e+01 : f32
    %280 = vector.broadcast %cst_141 : f32 to vector<1x128xf32>
    %281 = arith.select %63, %280, %279 : vector<1x128xi1>, vector<1x128xf32>
    %cst_142 = arith.constant 2.900000e+01 : f32
    %282 = vector.broadcast %cst_142 : f32 to vector<1x128xf32>
    %283 = arith.select %65, %282, %281 : vector<1x128xi1>, vector<1x128xf32>
    %cst_143 = arith.constant 2.200000e+01 : f32
    %284 = vector.broadcast %cst_143 : f32 to vector<1x128xf32>
    %285 = arith.select %75, %284, %283 : vector<1x128xi1>, vector<1x128xf32>
    %cst_144 = arith.constant 2.600000e+01 : f32
    %286 = vector.broadcast %cst_144 : f32 to vector<1x128xf32>
    %287 = arith.select %77, %286, %285 : vector<1x128xi1>, vector<1x128xf32>
    %288 = arith.mulf %276, %55 : vector<1x128xf32>
    %289 = arith.addf %288, %287 : vector<1x128xf32>
    %290 = arith.select %89, %259, %260 : vector<1x128xi1>, vector<1x128xf32>
    %291 = arith.select %89, %289, %261 : vector<1x128xi1>, vector<1x128xf32>
    %292 = arith.select %129, %259, %262 : vector<1x128xi1>, vector<1x128xf32>
    %293 = arith.select %129, %289, %263 : vector<1x128xi1>, vector<1x128xf32>
    %cst_145 = arith.constant -5.000000e-02 : f32
    %294 = vector.broadcast %cst_145 : f32 to vector<1x128xf32>
    %cst_146 = arith.constant 0.000000e+00 : f32
    %295 = vector.broadcast %cst_146 : f32 to vector<1x128xf32>
    %296 = arith.select %57, %295, %294 : vector<1x128xi1>, vector<1x128xf32>
    %cst_147 = arith.constant 1.000000e-01 : f32
    %297 = vector.broadcast %cst_147 : f32 to vector<1x128xf32>
    %298 = arith.select %59, %297, %296 : vector<1x128xi1>, vector<1x128xf32>
    %cst_148 = arith.constant 0.000000e+00 : f32
    %299 = vector.broadcast %cst_148 : f32 to vector<1x128xf32>
    %300 = arith.select %63, %299, %298 : vector<1x128xi1>, vector<1x128xf32>
    %cst_149 = arith.constant -1.000000e-01 : f32
    %301 = vector.broadcast %cst_149 : f32 to vector<1x128xf32>
    %302 = arith.select %65, %301, %300 : vector<1x128xi1>, vector<1x128xf32>
    %cst_150 = arith.constant 0.000000e+00 : f32
    %303 = vector.broadcast %cst_150 : f32 to vector<1x128xf32>
    %304 = arith.select %69, %303, %302 : vector<1x128xi1>, vector<1x128xf32>
    %cst_151 = arith.constant -2.000000e-01 : f32
    %305 = vector.broadcast %cst_151 : f32 to vector<1x128xf32>
    %306 = arith.select %73, %305, %304 : vector<1x128xi1>, vector<1x128xf32>
    %cst_152 = arith.constant 0.000000e+00 : f32
    %307 = vector.broadcast %cst_152 : f32 to vector<1x128xf32>
    %308 = arith.select %75, %307, %306 : vector<1x128xi1>, vector<1x128xf32>
    %cst_153 = arith.constant 2.000000e-01 : f32
    %309 = vector.broadcast %cst_153 : f32 to vector<1x128xf32>
    %310 = arith.select %77, %309, %308 : vector<1x128xi1>, vector<1x128xf32>
    %cst_154 = arith.constant 0.000000e+00 : f32
    %311 = vector.broadcast %cst_154 : f32 to vector<1x128xf32>
    %312 = arith.select %79, %311, %310 : vector<1x128xi1>, vector<1x128xf32>
    %cst_155 = arith.constant 2.750000e+01 : f32
    %313 = vector.broadcast %cst_155 : f32 to vector<1x128xf32>
    %cst_156 = arith.constant 2.850000e+01 : f32
    %314 = vector.broadcast %cst_156 : f32 to vector<1x128xf32>
    %315 = arith.select %57, %314, %313 : vector<1x128xi1>, vector<1x128xf32>
    %cst_157 = arith.constant 2.950000e+01 : f32
    %316 = vector.broadcast %cst_157 : f32 to vector<1x128xf32>
    %317 = arith.select %59, %316, %315 : vector<1x128xi1>, vector<1x128xf32>
    %cst_158 = arith.constant 3.000000e+01 : f32
    %318 = vector.broadcast %cst_158 : f32 to vector<1x128xf32>
    %319 = arith.select %63, %318, %317 : vector<1x128xi1>, vector<1x128xf32>
    %cst_159 = arith.constant 3.100000e+01 : f32
    %320 = vector.broadcast %cst_159 : f32 to vector<1x128xf32>
    %321 = arith.select %65, %320, %319 : vector<1x128xi1>, vector<1x128xf32>
    %cst_160 = arith.constant 2.900000e+01 : f32
    %322 = vector.broadcast %cst_160 : f32 to vector<1x128xf32>
    %323 = arith.select %69, %322, %321 : vector<1x128xi1>, vector<1x128xf32>
    %cst_161 = arith.constant 3.500000e+01 : f32
    %324 = vector.broadcast %cst_161 : f32 to vector<1x128xf32>
    %325 = arith.select %73, %324, %323 : vector<1x128xi1>, vector<1x128xf32>
    %cst_162 = arith.constant 2.800000e+01 : f32
    %326 = vector.broadcast %cst_162 : f32 to vector<1x128xf32>
    %327 = arith.select %75, %326, %325 : vector<1x128xi1>, vector<1x128xf32>
    %cst_163 = arith.constant 2.000000e+01 : f32
    %328 = vector.broadcast %cst_163 : f32 to vector<1x128xf32>
    %329 = arith.select %77, %328, %327 : vector<1x128xi1>, vector<1x128xf32>
    %cst_164 = arith.constant 2.900000e+01 : f32
    %330 = vector.broadcast %cst_164 : f32 to vector<1x128xf32>
    %331 = arith.select %79, %330, %329 : vector<1x128xi1>, vector<1x128xf32>
    %332 = arith.mulf %312, %55 : vector<1x128xf32>
    %333 = arith.addf %332, %331 : vector<1x128xf32>
    %334 = arith.select %91, %289, %290 : vector<1x128xi1>, vector<1x128xf32>
    %335 = arith.select %91, %333, %291 : vector<1x128xi1>, vector<1x128xf32>
    %336 = arith.select %131, %289, %292 : vector<1x128xi1>, vector<1x128xf32>
    %337 = arith.select %131, %333, %293 : vector<1x128xi1>, vector<1x128xf32>
    %cst_165 = arith.constant -5.000000e-02 : f32
    %338 = vector.broadcast %cst_165 : f32 to vector<1x128xf32>
    %cst_166 = arith.constant 0.000000e+00 : f32
    %339 = vector.broadcast %cst_166 : f32 to vector<1x128xf32>
    %340 = arith.select %57, %339, %338 : vector<1x128xi1>, vector<1x128xf32>
    %cst_167 = arith.constant 1.000000e-01 : f32
    %341 = vector.broadcast %cst_167 : f32 to vector<1x128xf32>
    %342 = arith.select %59, %341, %340 : vector<1x128xi1>, vector<1x128xf32>
    %cst_168 = arith.constant 0.000000e+00 : f32
    %343 = vector.broadcast %cst_168 : f32 to vector<1x128xf32>
    %344 = arith.select %63, %343, %342 : vector<1x128xi1>, vector<1x128xf32>
    %cst_169 = arith.constant -2.000000e-01 : f32
    %345 = vector.broadcast %cst_169 : f32 to vector<1x128xf32>
    %346 = arith.select %67, %345, %344 : vector<1x128xi1>, vector<1x128xf32>
    %cst_170 = arith.constant 0.000000e+00 : f32
    %347 = vector.broadcast %cst_170 : f32 to vector<1x128xf32>
    %348 = arith.select %69, %347, %346 : vector<1x128xi1>, vector<1x128xf32>
    %cst_171 = arith.constant 2.950000e+01 : f32
    %349 = vector.broadcast %cst_171 : f32 to vector<1x128xf32>
    %cst_172 = arith.constant 3.050000e+01 : f32
    %350 = vector.broadcast %cst_172 : f32 to vector<1x128xf32>
    %351 = arith.select %57, %350, %349 : vector<1x128xi1>, vector<1x128xf32>
    %cst_173 = arith.constant 3.150000e+01 : f32
    %352 = vector.broadcast %cst_173 : f32 to vector<1x128xf32>
    %353 = arith.select %59, %352, %351 : vector<1x128xi1>, vector<1x128xf32>
    %cst_174 = arith.constant 3.200000e+01 : f32
    %354 = vector.broadcast %cst_174 : f32 to vector<1x128xf32>
    %355 = arith.select %63, %354, %353 : vector<1x128xi1>, vector<1x128xf32>
    %cst_175 = arith.constant 3.500000e+01 : f32
    %356 = vector.broadcast %cst_175 : f32 to vector<1x128xf32>
    %357 = arith.select %67, %356, %355 : vector<1x128xi1>, vector<1x128xf32>
    %cst_176 = arith.constant 3.100000e+01 : f32
    %358 = vector.broadcast %cst_176 : f32 to vector<1x128xf32>
    %359 = arith.select %69, %358, %357 : vector<1x128xi1>, vector<1x128xf32>
    %360 = arith.mulf %348, %55 : vector<1x128xf32>
    %361 = arith.addf %360, %359 : vector<1x128xf32>
    %362 = arith.select %93, %333, %334 : vector<1x128xi1>, vector<1x128xf32>
    %363 = arith.select %93, %361, %335 : vector<1x128xi1>, vector<1x128xf32>
    %364 = arith.select %133, %333, %336 : vector<1x128xi1>, vector<1x128xf32>
    %365 = arith.select %133, %361, %337 : vector<1x128xi1>, vector<1x128xf32>
    %cst_177 = arith.constant 0.000000e+00 : f32
    %366 = vector.broadcast %cst_177 : f32 to vector<1x128xf32>
    %cst_178 = arith.constant 1.000000e-01 : f32
    %367 = vector.broadcast %cst_178 : f32 to vector<1x128xf32>
    %368 = arith.select %59, %367, %366 : vector<1x128xi1>, vector<1x128xf32>
    %cst_179 = arith.constant 0.000000e+00 : f32
    %369 = vector.broadcast %cst_179 : f32 to vector<1x128xf32>
    %370 = arith.select %61, %369, %368 : vector<1x128xi1>, vector<1x128xf32>
    %cst_180 = arith.constant -2.000000e-01 : f32
    %371 = vector.broadcast %cst_180 : f32 to vector<1x128xf32>
    %372 = arith.select %77, %371, %370 : vector<1x128xi1>, vector<1x128xf32>
    %cst_181 = arith.constant 0.000000e+00 : f32
    %373 = vector.broadcast %cst_181 : f32 to vector<1x128xf32>
    %374 = arith.select %79, %373, %372 : vector<1x128xi1>, vector<1x128xf32>
    %cst_182 = arith.constant 3.200000e+01 : f32
    %375 = vector.broadcast %cst_182 : f32 to vector<1x128xf32>
    %cst_183 = arith.constant 3.300000e+01 : f32
    %376 = vector.broadcast %cst_183 : f32 to vector<1x128xf32>
    %377 = arith.select %59, %376, %375 : vector<1x128xi1>, vector<1x128xf32>
    %cst_184 = arith.constant 4.100000e+01 : f32
    %378 = vector.broadcast %cst_184 : f32 to vector<1x128xf32>
    %379 = arith.select %77, %378, %377 : vector<1x128xi1>, vector<1x128xf32>
    %cst_185 = arith.constant 3.200000e+01 : f32
    %380 = vector.broadcast %cst_185 : f32 to vector<1x128xf32>
    %381 = arith.select %79, %380, %379 : vector<1x128xi1>, vector<1x128xf32>
    %382 = arith.mulf %374, %55 : vector<1x128xf32>
    %383 = arith.addf %382, %381 : vector<1x128xf32>
    %384 = arith.select %95, %361, %362 : vector<1x128xi1>, vector<1x128xf32>
    %385 = arith.select %95, %383, %363 : vector<1x128xi1>, vector<1x128xf32>
    %386 = arith.select %135, %361, %364 : vector<1x128xi1>, vector<1x128xf32>
    %387 = arith.select %135, %383, %365 : vector<1x128xi1>, vector<1x128xf32>
    %cst_186 = arith.constant 0.000000e+00 : f32
    %388 = vector.broadcast %cst_186 : f32 to vector<1x128xf32>
    %cst_187 = arith.constant 4.000000e-01 : f32
    %389 = vector.broadcast %cst_187 : f32 to vector<1x128xf32>
    %390 = arith.select %57, %389, %388 : vector<1x128xi1>, vector<1x128xf32>
    %cst_188 = arith.constant 0.000000e+00 : f32
    %391 = vector.broadcast %cst_188 : f32 to vector<1x128xf32>
    %392 = arith.select %59, %391, %390 : vector<1x128xi1>, vector<1x128xf32>
    %cst_189 = arith.constant 3.200000e+01 : f32
    %393 = vector.broadcast %cst_189 : f32 to vector<1x128xf32>
    %cst_190 = arith.constant 4.000000e+01 : f32
    %394 = vector.broadcast %cst_190 : f32 to vector<1x128xf32>
    %395 = arith.select %57, %394, %393 : vector<1x128xi1>, vector<1x128xf32>
    %cst_191 = arith.constant 3.600000e+01 : f32
    %396 = vector.broadcast %cst_191 : f32 to vector<1x128xf32>
    %397 = arith.select %59, %396, %395 : vector<1x128xi1>, vector<1x128xf32>
    %398 = arith.mulf %392, %55 : vector<1x128xf32>
    %399 = arith.addf %398, %397 : vector<1x128xf32>
    %400 = arith.select %97, %383, %384 : vector<1x128xi1>, vector<1x128xf32>
    %401 = arith.select %97, %399, %385 : vector<1x128xi1>, vector<1x128xf32>
    %402 = arith.select %137, %383, %386 : vector<1x128xi1>, vector<1x128xf32>
    %403 = arith.select %137, %399, %387 : vector<1x128xi1>, vector<1x128xf32>
    %404 = arith.subf %401, %400 : vector<1x128xf32>
    %405 = arith.mulf %119, %404 : vector<1x128xf32>
    %406 = arith.addf %400, %405 : vector<1x128xf32>
    %407 = arith.subf %406, %3 : vector<1x128xf32>
    %408 = arith.subf %403, %402 : vector<1x128xf32>
    %409 = arith.mulf %159, %408 : vector<1x128xf32>
    %410 = arith.addf %402, %409 : vector<1x128xf32>
    %411 = arith.subf %410, %3 : vector<1x128xf32>
    %412 = arith.minimumf %407, %411 : vector<1x128xf32>
    %cst_192 = arith.constant -2.000000e+01 : f32
    %cst_193 = arith.constant 2.000000e+01 : f32
    %413 = vector.broadcast %cst_192 : f32 to vector<1x128xf32>
    %414 = arith.maximumf %413, %412 : vector<1x128xf32>
    %415 = vector.broadcast %cst_193 : f32 to vector<1x128xf32>
    %416 = arith.minimumf %415, %414 : vector<1x128xf32>
    %cst_194 = arith.constant -1.000000e+01 : f32
    %417 = vector.broadcast %cst_194 : f32 to vector<1x128xf32>
    %418 = arith.cmpf oge, %416, %417 : vector<1x128xf32>
    %cst_195 = arith.constant -5.000000e+00 : f32
    %419 = vector.broadcast %cst_195 : f32 to vector<1x128xf32>
    %420 = arith.cmpf oge, %416, %419 : vector<1x128xf32>
    %cst_196 = arith.constant 0.000000e+00 : f32
    %421 = vector.broadcast %cst_196 : f32 to vector<1x128xf32>
    %422 = arith.cmpf oge, %416, %421 : vector<1x128xf32>
    %cst_197 = arith.constant 5.000000e+00 : f32
    %423 = vector.broadcast %cst_197 : f32 to vector<1x128xf32>
    %424 = arith.cmpf oge, %416, %423 : vector<1x128xf32>
    %cst_198 = arith.constant 1.000000e+01 : f32
    %425 = vector.broadcast %cst_198 : f32 to vector<1x128xf32>
    %426 = arith.cmpf oge, %416, %425 : vector<1x128xf32>
    %cst_199 = arith.constant 1.500000e+01 : f32
    %427 = vector.broadcast %cst_199 : f32 to vector<1x128xf32>
    %428 = arith.cmpf oge, %416, %427 : vector<1x128xf32>
    %cst_200 = arith.constant -2.000000e-01 : f32
    %429 = vector.broadcast %cst_200 : f32 to vector<1x128xf32>
    %cst_201 = arith.constant -1.000000e-01 : f32
    %430 = vector.broadcast %cst_201 : f32 to vector<1x128xf32>
    %431 = arith.select %418, %430, %429 : vector<1x128xi1>, vector<1x128xf32>
    %cst_202 = arith.constant -2.000000e-02 : f32
    %432 = vector.broadcast %cst_202 : f32 to vector<1x128xf32>
    %433 = arith.select %420, %432, %431 : vector<1x128xi1>, vector<1x128xf32>
    %cst_203 = arith.constant 2.000000e-02 : f32
    %434 = vector.broadcast %cst_203 : f32 to vector<1x128xf32>
    %435 = arith.select %422, %434, %433 : vector<1x128xi1>, vector<1x128xf32>
    %cst_204 = arith.constant 2.000000e-01 : f32
    %436 = vector.broadcast %cst_204 : f32 to vector<1x128xf32>
    %437 = arith.select %424, %436, %435 : vector<1x128xi1>, vector<1x128xf32>
    %cst_205 = arith.constant 3.000000e-01 : f32
    %438 = vector.broadcast %cst_205 : f32 to vector<1x128xf32>
    %439 = arith.select %426, %438, %437 : vector<1x128xi1>, vector<1x128xf32>
    %cst_206 = arith.constant 6.000000e-01 : f32
    %440 = vector.broadcast %cst_206 : f32 to vector<1x128xf32>
    %441 = arith.select %428, %440, %439 : vector<1x128xi1>, vector<1x128xf32>
    %442 = arith.mulf %441, %416 : vector<1x128xf32>
    %cst_207 = arith.constant -1.000000e+00 : f32
    %443 = vector.broadcast %cst_207 : f32 to vector<1x128xf32>
    %cst_208 = arith.constant 0.000000e+00 : f32
    %444 = vector.broadcast %cst_208 : f32 to vector<1x128xf32>
    %445 = arith.select %418, %444, %443 : vector<1x128xi1>, vector<1x128xf32>
    %cst_209 = arith.constant 4.000000e-01 : f32
    %446 = vector.broadcast %cst_209 : f32 to vector<1x128xf32>
    %447 = arith.select %420, %446, %445 : vector<1x128xi1>, vector<1x128xf32>
    %cst_210 = arith.constant -5.000000e-01 : f32
    %448 = vector.broadcast %cst_210 : f32 to vector<1x128xf32>
    %449 = arith.select %424, %448, %447 : vector<1x128xi1>, vector<1x128xf32>
    %cst_211 = arith.constant -1.500000e+00 : f32
    %450 = vector.broadcast %cst_211 : f32 to vector<1x128xf32>
    %451 = arith.select %426, %450, %449 : vector<1x128xi1>, vector<1x128xf32>
    %cst_212 = arith.constant -6.000000e+00 : f32
    %452 = vector.broadcast %cst_212 : f32 to vector<1x128xf32>
    %453 = arith.select %428, %452, %451 : vector<1x128xi1>, vector<1x128xf32>
    %454 = arith.addf %442, %453 : vector<1x128xf32>
    %455 = arith.minimumf %51, %454 : vector<1x128xf32>
    %c0_213 = arith.constant 0 : index
    %c0_214 = arith.constant 0 : index
    %456 = vector.load %arg5[%c0_213, %c0_214] : memref<1x128xf32, #tpu.memory_space<vmem>>, vector<1x128xf32>
    tpu.vector_store %arg5[%c0_213, %c0_214], %455 {strides = array<i32>} : memref<1x128xf32, #tpu.memory_space<vmem>>, vector<1x128xf32>,
    return
  }
  func.func @transform_0(%arg0: i32) -> (i32, i32) {
    %c0_i32 = arith.constant 0 : i32
    %c0_i32_0 = arith.constant 0 : i32
    return %arg0, %c0_i32 : i32, i32
  }
  func.func @transform_1(%arg0: i32) -> (i32, i32) {
    %c0_i32 = arith.constant 0 : i32
    %c0_i32_0 = arith.constant 0 : i32
    return %arg0, %c0_i32 : i32, i32
  }
  func.func @transform_2(%arg0: i32) -> (i32, i32) {
    %c0_i32 = arith.constant 0 : i32
    %c0_i32_0 = arith.constant 0 : i32
    return %arg0, %c0_i32 : i32, i32
  }
  func.func @transform_3(%arg0: i32) -> (i32, i32) {
    %c0_i32 = arith.constant 0 : i32
    %c0_i32_0 = arith.constant 0 : i32
    return %arg0, %c0_i32 : i32, i32
  }
  func.func @transform_4(%arg0: i32) -> (i32, i32) {
    %c0_i32 = arith.constant 0 : i32
    %c0_i32_0 = arith.constant 0 : i32
    return %arg0, %c0_i32 : i32, i32
  }
}

</mosaic_0001>

<llo_original>
// kernel: _forward_impl.1
$region0: #{_forward_impl.1}
  #allocation0 [shape = 'u32[]', space=smem, size = 0x4, offset = 0x4, fixed_abs, tag = 'smem constant byte address 0x4 - core index']
  #allocation1 [shape = 'u32[144,128]{1,0:T(1,128)}', space=vmem, size = 0x12000, scoped, tag = 'internal scratch']
  %s0 = inlined_call_operand.vmem [shape: f32[1,128], index: 0, kind: input, shape index: {}]
  %s1 = inlined_call_operand.vmem [shape: f32[1,128], index: 1, kind: input, shape index: {}]
  %s2 = inlined_call_operand.vmem [shape: f32[1,128], index: 2, kind: input, shape index: {}]
  %s3 = inlined_call_operand.vmem [shape: f32[1,128], index: 3, kind: input, shape index: {}]
  %s4 = inlined_call_operand.vmem [shape: f32[1,128], index: 4, kind: output, shape index: {}]
  %s5 = sld [smem:[#allocation0]]
  $region26: #{_forward_impl.1} parent=0
    _
  %s7 = ssub.s32 1, %s5
  %s8 = scalar_select 0, %s7, %s5
  // Predicated region
  $region2: #{_forward_impl.1} parent=0 // pred_check
    _
  $region3: #{_forward_impl.1} parent=0 // pred_check_branch
    %10 = sbr.rel (0) target = $region5
  $region4: #{_forward_impl.1} parent=0 // pred_region
    _
  $region5: #{_forward_impl.1} parent=0 // pred_fallthru
    _
  // Predicated region
  $region6: #{_forward_impl.1} parent=0 // pred_check
    _
  $region7: #{_forward_impl.1} parent=0 // pred_check_branch
    %12 = sbr.rel (0) target = $region9
  $region8: #{_forward_impl.1} parent=0 // pred_region
    _
  $region9: #{_forward_impl.1} parent=0 // pred_fallthru
    _
  // Predicated region
  $region10: #{_forward_impl.1} parent=0 // pred_check
    _
  $region11: #{_forward_impl.1} parent=0 // pred_check_branch
    %14 = sbr.rel (0) target = $region13
  $region12: #{_forward_impl.1} parent=0 // pred_region
    _
  $region13: #{_forward_impl.1} parent=0 // pred_fallthru
    _
  // Predicated region
  $region14: #{_forward_impl.1} parent=0 // pred_check
    _
  $region15: #{_forward_impl.1} parent=0 // pred_check_branch
    %16 = sbr.rel (0) target = $region17
  $region16: #{_forward_impl.1} parent=0 // pred_region
    _
  $region17: #{_forward_impl.1} parent=0 // pred_fallthru
    _
  %v17 = vld [vmem:[%s0] sm:$0x1]
  %v18 = vld [vmem:[%s1] sm:$0x1]
  %v19 = vld [vmem:[%s2] sm:$0x1]
  %v20 = vld [vmem:[%s3] sm:$0x1]
  %v21 = vmax.f32 %v17, -20.0
  %v22 = vmin.f32 %v21, 45.0
  %vm23 = vcmp.ge.f32.partialorder %v22, -10.0
  %vm24 = vcmp.ge.f32.partialorder %v22, 0.0
  %vm25 = vcmp.ge.f32.partialorder %v22, 10.0
  %vm26 = vcmp.ge.f32.partialorder %v22, 25.0
  %vm27 = vcmp.ge.f32.partialorder %v22, 30.0
  %vm28 = vcmp.ge.f32.partialorder %v22, 35.0
  %vm29 = vcmp.ge.f32.partialorder %v22, 40.0
  %v30 = vsel %vm23, -0.112, -0.1
  %v31 = vsel %vm24, -0.05, %v30
  %v32 = vsel %vm25, 0.021333333, %v31
  %v33 = vsel %vm26, 0.060000002, %v32
  %v34 = vsel %vm27, 0.061999988, %v33
  %v35 = vsel %vm28, 0.238, %v34
  %v36 = vsel %vm29, 0.1, %v35
  %v37 = vmul.f32 %v36, %v22
  %v38 = vsel %vm23, 0.88, 1.0
  %v39 = vsel %vm25, 0.16666667, %v38
  %v40 = vsel %vm26, -0.8000001, %v39
  %v41 = vsel %vm27, -0.85999966, %v40
  %v42 = vsel %vm28, -7.0200005, %v41
  %v43 = vsel %vm29, -1.5, %v42
  %v44 = vadd.f32 %v37, %v43
  %v45 = vmax.f32 %v17, -30.0
  %v46 = vmin.f32 %v45, 50.0
  %vm47 = vcmp.ge.f32.partialorder %v46, -20.0
  %vm48 = vcmp.ge.f32.partialorder %v46, -10.0
  %vm49 = vcmp.ge.f32.partialorder %v46, 0.0
  %vm50 = vcmp.ge.f32.partialorder %v46, 5.0
  %vm51 = vcmp.ge.f32.partialorder %v46, 10.0
  %vm52 = vcmp.ge.f32.partialorder %v46, 15.0
  %vm53 = vcmp.ge.f32.partialorder %v46, 20.0
  %vm54 = vcmp.ge.f32.partialorder %v46, 25.0
  %vm55 = vcmp.ge.f32.partialorder %v46, 30.0
  %vm56 = vcmp.ge.f32.partialorder %v46, 35.0
  %vm57 = vcmp.ge.f32.partialorder %v46, 40.0
  %vm58 = vcmp.ge.f32.partialorder %v46, 45.0
  %v59 = vmax.f32 %v18, 18.0
  %v60 = vmin.f32 %v59, 32.0
  %vm61 = vcmp.ge.f32.partialorder %v60, 20.0
  %vm62 = vcmp.ge.f32.partialorder %v60, 22.0
  %vm63 = vcmp.ge.f32.partialorder %v60, 24.0
  %vm64 = vcmp.ge.f32.partialorder %v60, 26.0
  %vm65 = vcmp.ge.f32.partialorder %v60, 28.0
  %vm66 = vcmp.ge.f32.partialorder %v60, 30.0
  %vm67 = vcmp.ge.f32.partialorder %v60, 31.5
  %v68 = vsel %vm61, 20.0, 18.0
  %v69 = vsel %vm62, 22.0, %v68
  %v70 = vsel %vm63, 24.0, %v69
  %v71 = vsel %vm64, 26.0, %v70
  %v72 = vsel %vm65, 28.0, %v71
  %v73 = vsel %vm66, 30.0, %v72
  %v74 = vsel %vm67, 31.5, %v73
  %v75 = vsub.f32 %v60, %v74
  %v76 = vsel %vm66, 0.6666667, 0.5
  %v77 = vsel %vm67, 2.0, %v76
  %v78 = vmul.f32 %v75, %v77
  %v79 = vmax.f32 %v19, 18.0
  %v80 = vmin.f32 %v79, 32.0
  %vm81 = vcmp.ge.f32.partialorder %v80, 20.0
  %vm82 = vcmp.ge.f32.partialorder %v80, 22.0
  %vm83 = vcmp.ge.f32.partialorder %v80, 24.0
  %vm84 = vcmp.ge.f32.partialorder %v80, 26.0
  %vm85 = vcmp.ge.f32.partialorder %v80, 28.0
  %vm86 = vcmp.ge.f32.partialorder %v80, 30.0
  %vm87 = vcmp.ge.f32.partialorder %v80, 31.5
  %v88 = vsel %vm81, 20.0, 18.0
  %v89 = vsel %vm82, 22.0, %v88
  %v90 = vsel %vm83, 24.0, %v89
  %v91 = vsel %vm84, 26.0, %v90
  %v92 = vsel %vm85, 28.0, %v91
  %v93 = vsel %vm86, 30.0, %v92
  %v94 = vsel %vm87, 31.5, %v93
  %v95 = vsub.f32 %v80, %v94
  %v96 = vsel %vm86, 0.6666667, 0.5
  %v97 = vsel %vm87, 2.0, %v96
  %v98 = vmul.f32 %v95, %v97
  %v99 = vmul.f32 %v46, 0.0
  %v100 = vadd.f32 %v99, 17.0
  %v101 = vsel %vm47, -0.05, 0.0
  %v102 = vsel %vm48, 0.0, %v101
  %v103 = vsel %vm50, -0.1, %v102
  %v104 = vsel %vm51, 0.0, %v103
  %v105 = vsel %vm53, -0.1, %v104
  %v106 = vsel %vm54, 0.0, %v105
  %v107 = vsel %vm55, -0.1, %v106
  %v108 = vsel %vm56, 0.0, %v107
  %v109 = vsel %vm47, 19.0, 20.0
  %v110 = vsel %vm48, 19.5, %v109
  %v111 = vsel %vm50, 20.0, %v110
  %v112 = vsel %vm51, 19.0, %v111
  %v113 = vsel %vm53, 21.0, %v112
  %v114 = vsel %vm54, 18.5, %v113
  %v115 = vsel %vm55, 21.5, %v114
  %v116 = vsel %vm56, 18.0, %v115
  %v117 = vmul.f32 %v108, %v46
  %v118 = vadd.f32 %v117, %v116
  %v119 = vsel %vm48, 0.05, 0.0
  %v120 = vsel %vm49, 0.0, %v119
  %v121 = vsel %vm51, -0.1, %v120
  %v122 = vsel %vm52, 0.0, %v121
  %v123 = vsel %vm53, -0.2, %v122
  %v124 = vsel %vm54, 0.0, %v123
  %v125 = vsel %vm57, -0.1, %v124
  %v126 = vsel %vm48, 22.5, 22.0
  %v127 = vsel %vm51, 23.5, %v126
  %v128 = vsel %vm52, 22.0, %v127
  %v129 = vsel %vm53, 26.0, %v128
  %v130 = vsel %vm54, 21.0, %v129
  %v131 = vsel %vm57, 25.0, %v130
  %v132 = vmul.f32 %v125, %v46
  %v133 = vadd.f32 %v132, %v131
  %v134 = vsel %vm61, %v118, %v100
  %v135 = vsel %vm61, %v133, %v118
  %v136 = vsel %vm81, %v118, %v100
  %v137 = vsel %vm81, %v133, %v118
  %v138 = vsel %vm47, 0.1, 0.05
  %v139 = vsel %vm48, 0.0, %v138
  %v140 = vsel %vm49, 0.1, %v139
  %v141 = vsel %vm50, 0.0, %v140
  %v142 = vsel %vm51, -0.1, %v141
  %v143 = vsel %vm57, 0.0, %v142
  %v144 = vsel %vm47, 26.5, 25.5
  %v145 = vsel %vm48, 25.5, %v144
  %v146 = vsel %vm50, 26.0, %v145
  %v147 = vsel %vm51, 27.0, %v146
  %v148 = vsel %vm57, 23.0, %v147
  %v149 = vmul.f32 %v143, %v46
  %v150 = vadd.f32 %v149, %v148
  %v151 = vsel %vm62, %v133, %v134
  %v152 = vsel %vm62, %v150, %v135
  %v153 = vsel %vm82, %v133, %v136
  %v154 = vsel %vm82, %v150, %v137
  %v155 = vsel %vm47, 0.05, -0.05
  %v156 = vsel %vm49, 0.1, %v155
  %v157 = vsel %vm50, 0.0, %v156
  %v158 = vsel %vm51, -0.1, %v157
  %v159 = vsel %vm56, 0.1, %v158
  %v160 = vsel %vm57, 0.0, %v159
  %v161 = vsel %vm47, 27.5, 25.5
  %v162 = vsel %vm50, 28.0, %v161
  %v163 = vsel %vm51, 29.0, %v162
  %v164 = vsel %vm56, 22.0, %v163
  %v165 = vsel %vm57, 26.0, %v164
  %v166 = vmul.f32 %v160, %v46
  %v167 = vadd.f32 %v166, %v165
  %v168 = vsel %vm63, %v150, %v151
  %v169 = vsel %vm63, %v167, %v152
  %v170 = vsel %vm83, %v150, %v153
  %v171 = vsel %vm83, %v167, %v154
  %v172 = vsel %vm47, 0.0, -0.05
  %v173 = vsel %vm48, 0.1, %v172
  %v174 = vsel %vm50, 0.0, %v173
  %v175 = vsel %vm51, -0.1, %v174
  %v176 = vsel %vm53, 0.0, %v175
  %v177 = vsel %vm55, -0.2, %v176
  %v178 = vsel %vm56, 0.0, %v177
  %v179 = vsel %vm57, 0.2, %v178
  %v180 = vsel %vm58, 0.0, %v179
  %v181 = vsel %vm47, 28.5, 27.5
  %v182 = vsel %vm48, 29.5, %v181
  %v183 = vsel %vm50, 30.0, %v182
  %v184 = vsel %vm51, 31.0, %v183
  %v185 = vsel %vm53, 29.0, %v184
  %v186 = vsel %vm55, 35.0, %v185
  %v187 = vsel %vm56, 28.0, %v186
  %v188 = vsel %vm57, 20.0, %v187
  %v189 = vsel %vm58, 29.0, %v188
  %v190 = vmul.f32 %v180, %v46
  %v191 = vadd.f32 %v190, %v189
  %v192 = vsel %vm64, %v167, %v168
  %v193 = vsel %vm64, %v191, %v169
  %v194 = vsel %vm84, %v167, %v170
  %v195 = vsel %vm84, %v191, %v171
  %v196 = vsel %vm52, -0.2, %v174
  %v197 = vsel %vm53, 0.0, %v196
  %v198 = vsel %vm47, 30.5, 29.5
  %v199 = vsel %vm48, 31.5, %v198
  %v200 = vsel %vm50, 32.0, %v199
  %v201 = vsel %vm52, 35.0, %v200
  %v202 = vsel %vm53, 31.0, %v201
  %v203 = vmul.f32 %v197, %v46
  %v204 = vadd.f32 %v203, %v202
  %v205 = vsel %vm65, %v191, %v192
  %v206 = vsel %vm65, %v204, %v193
  %v207 = vsel %vm85, %v191, %v194
  %v208 = vsel %vm85, %v204, %v195
  %v209 = vsel %vm48, 0.1, 0.0
  %v210 = vsel %vm49, 0.0, %v209
  %v211 = vsel %vm57, -0.2, %v210
  %v212 = vsel %vm58, 0.0, %v211
  %v213 = vsel %vm48, 33.0, 32.0
  %v214 = vsel %vm57, 41.0, %v213
  %v215 = vsel %vm58, 32.0, %v214
  %v216 = vmul.f32 %v212, %v46
  %v217 = vadd.f32 %v216, %v215
  %v218 = vsel %vm66, %v204, %v205
  %v219 = vsel %vm66, %v217, %v206
  %v220 = vsel %vm86, %v204, %v207
  %v221 = vsel %vm86, %v217, %v208
  %v222 = vsel %vm47, 0.4, 0.0
  %v223 = vsel %vm48, 0.0, %v222
  %v224 = vsel %vm47, 40.0, 32.0
  %v225 = vsel %vm48, 36.0, %v224
  %v226 = vmul.f32 %v223, %v46
  %v227 = vadd.f32 %v226, %v225
  %v228 = vsel %vm67, %v217, %v218
  %v229 = vsel %vm67, %v227, %v219
  %v230 = vsel %vm87, %v217, %v220
  %v231 = vsel %vm87, %v227, %v221
  %v232 = vsub.f32 %v229, %v228
  %v233 = vmul.f32 %v78, %v232
  %v234 = vadd.f32 %v228, %v233
  %v235 = vsub.f32 %v234, %v20
  %v236 = vsub.f32 %v231, %v230
  %v237 = vmul.f32 %v98, %v236
  %v238 = vadd.f32 %v230, %v237
  %v239 = vsub.f32 %v238, %v20
  %v240 = vmin.f32 %v235, %v239
  %v241 = vmax.f32 %v240, -20.0
  %v242 = vmin.f32 %v241, 20.0
  %vm243 = vcmp.ge.f32.partialorder %v242, -10.0
  %vm244 = vcmp.ge.f32.partialorder %v242, -5.0
  %vm245 = vcmp.ge.f32.partialorder %v242, 0.0
  %vm246 = vcmp.ge.f32.partialorder %v242, 5.0
  %vm247 = vcmp.ge.f32.partialorder %v242, 10.0
  %vm248 = vcmp.ge.f32.partialorder %v242, 15.0
  %v249 = vsel %vm243, -0.1, -0.2
  %v250 = vsel %vm244, -0.02, %v249
  %v251 = vsel %vm245, 0.02, %v250
  %v252 = vsel %vm246, 0.2, %v251
  %v253 = vsel %vm247, 0.3, %v252
  %v254 = vsel %vm248, 0.6, %v253
  %v255 = vmul.f32 %v254, %v242
  %v256 = vsel %vm243, 0.0, -1.0
  %v257 = vsel %vm244, 0.4, %v256
  %v258 = vsel %vm246, -0.5, %v257
  %v259 = vsel %vm247, -1.5, %v258
  %v260 = vsel %vm248, -6.0, %v259
  %v261 = vadd.f32 %v255, %v260
  %v262 = vmin.f32 %v44, %v261
  %263 = vst [vmem:[%s4] sm:$0x1] %v262
  // Predicated region
  $region18: #{_forward_impl.1} parent=0 // pred_check
    _
  $region19: #{_forward_impl.1} parent=0 // pred_check_branch
    %265 = sbr.rel (0) target = $region21
  $region20: #{_forward_impl.1} parent=0 // pred_region
    _
  $region21: #{_forward_impl.1} parent=0 // pred_fallthru
    _
  // Predicated region
  $region22: #{_forward_impl.1} parent=0 // pred_check
    _
  $region23: #{_forward_impl.1} parent=0 // pred_check_branch
    %267 = sbr.rel (0) target = $region25
  $region24: #{_forward_impl.1} parent=0 // pred_region
    _
  $region25: #{_forward_impl.1} parent=0 // pred_fallthru
    _

</llo_original>
